<compile_context>
chip_gen: v7x
topology: tpu7x:2x2x1
jax: 0.10.0
libtpu: 0.0.40
codegen_flags: <defaults>
</compile_context>

<pallas_src>
import functools

import jax
import jax.numpy as jnp
from jax.experimental import pallas as pl
from jax.experimental.pallas import tpu as pltpu


def _round_up(x, m):
    return ((x + m - 1) // m) * m


def encoder_kernel(x_ref, w1_ref, b1_ref, wh_ref, bh_ref, out_ref, *,
                   sigma_start, split):
    # fc1 + tanh: bf16 x bf16 matmul, f32 accumulate (MXU), f32 bias, EUP tanh.
    h = jnp.tanh(
        jnp.dot(x_ref[...], w1_ref[...], preferred_element_type=jnp.float32)
        + b1_ref[...]
    )
    # Fused [mu | sigma] heads: one wide bf16 matmul, f32 accumulate.
    y = (jnp.dot(h.astype(wh_ref.dtype), wh_ref[...],
                 preferred_element_type=jnp.float32)
         + bh_ref[...])
    if split:
        # sigma_start is a multiple of 128 -> lane-group aligned slices,
        # unmasked stores; exp() only touches the sigma half (one EUP).
        out_ref[:, :sigma_start] = y[:, :sigma_start].astype(out_ref.dtype)
        out_ref[:, sigma_start:] = jnp.exp(y[:, sigma_start:]).astype(out_ref.dtype)
    else:
        # 2L <= 128: both heads live in one lane group; select exp on sigma lanes.
        col = jax.lax.broadcasted_iota(jnp.int32, y.shape, dimension=1)
        out_ref[...] = jnp.where(col >= sigma_start, jnp.exp(y), y).astype(out_ref.dtype)


def prepare_encoder_params(params):
    """One-time repack of PyTorch-layout weights into kernel layout.

    w1: (H, D), b1: (H,), w_mu/w_sigma: (L, H), b_mu/b_sigma: (L,)
    """
    H, D = params["w1"].shape
    L = params["w_mu"].shape[0]

    Hp = _round_up(H, 128)                   # lane-dense hidden width
    split = (2 * L) > 128
    if split:
        sigma_start = _round_up(L, 128)      # sigma half starts on a lane-group
        Np = 2 * sigma_start
    else:
        sigma_start = L                      # fused [mu|sigma|pad] in one group
        Np = 128

    bf16, f32 = jnp.bfloat16, jnp.float32
    # fc1 weights pre-transposed to (D, Hp); padded hidden columns are zero, so
    # tanh(0 + 0) = 0 and they contribute nothing downstream.
    w1 = jnp.zeros((D, Hp), bf16).at[:, :H].set(params["w1"].T.astype(bf16))
    b1 = jnp.zeros((1, Hp), f32).at[:, :H].set(params["b1"].astype(f32))
    # Fused heads [mu | (pad) | log_sigma_sq | (pad)].
    wh = jnp.zeros((Hp, Np), bf16)
    wh = wh.at[:H, :L].set(params["w_mu"].T.astype(bf16))
    wh = wh.at[:H, sigma_start:sigma_start + L].set(params["w_sigma"].T.astype(bf16))
    bh = jnp.zeros((1, Np), f32)
    bh = bh.at[:, :L].set(params["b_mu"].astype(f32))
    bh = bh.at[:, sigma_start:sigma_start + L].set(params["b_sigma"].astype(f32))

    return {
        "w1": w1, "b1": b1, "wh": wh, "bh": bh,
        "latent_dim": int(L), "sigma_start": int(sigma_start), "split": bool(split),
    }


def encoder_forward(x, packed, *, tile_m=512):
    """x: (B, data_dim) float32.  packed: output of prepare_encoder_params."""
    B, D = x.shape
    w1, b1, wh, bh = packed["w1"], packed["b1"], packed["wh"], packed["bh"]
    Hp = w1.shape[1]
    Np = wh.shape[1]
    L = packed["latent_dim"]
    sigma_start = packed["sigma_start"]
    split = packed["split"]

    # Batch tiling:
    #  - small batches: one full tile (rounded to sublane multiple of 8)
    #  - B >= 256: at least two grid steps so the "parallel" axis can be split
    #    across v7x's two TensorCores; tile capped at tile_m.
    if B >= 256:
        TM = min(tile_m, max(128, _round_up((B + 1) // 2, 8)))
    else:
        TM = _round_up(B, 8)
    Bp = _round_up(B, TM)            # pad so TM | Bp -> no ragged/masked tile
    grid = (Bp // TM,)

    xb = x.astype(jnp.bfloat16)      # halve streamed bytes; f32 accumulation in-kernel
    if Bp != B:
        xb = jnp.pad(xb, ((0, Bp - B), (0, 0)))

    # Explicit VMEM budget: double-buffered x/out tiles + single-buffered
    # resident weights + intermediates, with 2x headroom. Keeps v5e's 16 MiB
    # default from throttling pipelining and stays well inside v7x's 64 MiB.
    vmem_bytes = (
        2 * TM * D * 2          # x tiles (bf16, double-buffered)
        + 2 * TM * Np * 4       # out tiles (f32, double-buffered)
        + D * Hp * 2            # w1 (bf16, resident, single copy)
        + Hp * Np * 2           # wh (bf16, resident, single copy)
        + (Hp + Np) * 4         # biases (f32)
        + TM * (Hp + Np) * 4    # in-kernel h / y intermediates (f32)
    )
    vmem_limit = int(min(64 * 1024 * 1024, max(16 * 1024 * 1024, 2 * vmem_bytes)))

    cost = pl.CostEstimate(
        flops=2 * Bp * D * Hp + 2 * Bp * Hp * Np,
        transcendentals=Bp * (Hp + Np),          # tanh + exp
        bytes_accessed=2 * (Bp * D + D * Hp + Hp * Np) + 4 * (Hp + Np + Bp * Np),
    )

    out = pl.pallas_call(
        functools.partial(encoder_kernel, sigma_start=sigma_start, split=split),
        out_shape=jax.ShapeDtypeStruct((Bp, Np), jnp.float32),
        grid=grid,
        in_specs=[
            pl.BlockSpec((TM, D), lambda i: (i, 0)),                 # x tile (pipelined)
            pl.BlockSpec(memory_space=pltpu.MemorySpace.VMEM),       # w1  (resident, single buffer)
            pl.BlockSpec(memory_space=pltpu.MemorySpace.VMEM),       # b1
            pl.BlockSpec(memory_space=pltpu.MemorySpace.VMEM),       # wh
            pl.BlockSpec(memory_space=pltpu.MemorySpace.VMEM),       # bh
        ],
        out_specs=pl.BlockSpec((TM, Np), lambda i: (i, 0)),
        compiler_params=pltpu.CompilerParams(
            dimension_semantics=("parallel",),   # megacore sharding on v7x
            vmem_limit_bytes=vmem_limit,
        ),
        cost_estimate=cost,
    )(xb, w1, b1, wh, bh)

    mu = out[:B, :L]
    sigma_sq = out[:B, sigma_start:sigma_start + L]
    return mu, sigma_sq


def init_params(key, latent_dimension, hidden_units, data_dimension):
    ks = jax.random.split(key, 6)
    scale = 0.1
    return {
        "w1":      scale * jax.random.normal(ks[0], (hidden_units, data_dimension), jnp.float32),
        "b1":      scale * jax.random.normal(ks[1], (hidden_units,), jnp.float32),
        "w_mu":    scale * jax.random.normal(ks[2], (latent_dimension, hidden_units), jnp.float32),
        "b_mu":    scale * jax.random.normal(ks[3], (latent_dimension,), jnp.float32),
        "w_sigma": scale * jax.random.normal(ks[4], (latent_dimension, hidden_units), jnp.float32),
        "b_sigma": scale * jax.random.normal(ks[5], (latent_dimension,), jnp.float32),
    }


if __name__ == "__main__":
    key = jax.random.PRNGKey(0)
    k_x, k_p = jax.random.split(key)

    batch = 8
    data_dimension = 64
    hidden_units = 32
    latent_dimension = 16

    x = jax.random.normal(k_x, (batch, data_dimension), jnp.float32)
    params = init_params(k_p, latent_dimension, hidden_units, data_dimension)

    # One-time weight repack (hoisted out of the per-call path).
    packed = prepare_encoder_params(params)

    mu, sigma_sq = encoder_forward(x, packed)
    jax.block_until_ready((mu, sigma_sq))

    # Reference check in plain JAX (same math as the PyTorch module).
    # Tolerance loosened because the matmuls run in bf16 (f32 accumulation).
    h_ref = jnp.tanh(x @ params["w1"].T + params["b1"])
    mu_ref = h_ref @ params["w_mu"].T + params["b_mu"]
    sig_ref = jnp.exp(h_ref @ params["w_sigma"].T + params["b_sigma"])
    assert mu.shape == (batch, latent_dimension)
    assert sigma_sq.shape == (batch, latent_dimension)
    assert jnp.allclose(mu, mu_ref, atol=3e-2, rtol=3e-2), "mu mismatch"
    assert jnp.allclose(sigma_sq, sig_ref, atol=3e-2, rtol=3e-2), "sigma^2 mismatch"

    print("KERNEL_OK")
</pallas_src>

<mosaic_0001>
module attributes {stable_mosaic.version = 11 : i64} {
  func.func @encoder_kernel(%arg0: i32, %arg1: memref<8x64xbf16, #tpu.memory_space<vmem>>, %arg2: memref<64x128xbf16, #tpu.memory_space<vmem>>, %arg3: memref<1x128xf32, #tpu.memory_space<vmem>>, %arg4: memref<128x128xbf16, #tpu.memory_space<vmem>>, %arg5: memref<1x128xf32, #tpu.memory_space<vmem>>, %arg6: memref<8x128xf32, #tpu.memory_space<vmem>>) attributes {dimension_semantics = [#tpu.dimension_semantics<parallel>], iteration_bounds = array<i64: 1>, scalar_prefetch = 0 : i64, scratch_operands = 0 : i64, tpu.core_type = #tpu.core_type<tc>, window_params = [{transform_indices = @transform_0, window_bounds = array<i64: 8, 64>}, {pipeline_mode = #tpu.pipeline_mode<synchronous>, transform_indices = @transform_1, window_bounds = array<i64: 64, 128>}, {pipeline_mode = #tpu.pipeline_mode<synchronous>, transform_indices = @transform_2, window_bounds = array<i64: 1, 128>}, {pipeline_mode = #tpu.pipeline_mode<synchronous>, transform_indices = @transform_3, window_bounds = array<i64: 128, 128>}, {pipeline_mode = #tpu.pipeline_mode<synchronous>, transform_indices = @transform_4, window_bounds = array<i64: 1, 128>}, {transform_indices = @transform_5, window_bounds = array<i64: 8, 128>}]} {
    %c0 = arith.constant 0 : index
    %c0_0 = arith.constant 0 : index
    %0 = vector.load %arg1[%c0, %c0_0] : memref<8x64xbf16, #tpu.memory_space<vmem>>, vector<8x64xbf16>
    %c0_1 = arith.constant 0 : index
    %c0_2 = arith.constant 0 : index
    %1 = vector.load %arg2[%c0_1, %c0_2] : memref<64x128xbf16, #tpu.memory_space<vmem>>, vector<64x128xbf16>
    %cst = arith.constant dense<0.000000e+00> : vector<8x128xf32>
    %2 = tpu.matmul %0, %1, %cst {dimension_numbers = #tpu.dot_dimension_numbers<[1], [0], [0], [1], [0, 0, 1, 1], [], []>} : vector<8x64xbf16>, vector<64x128xbf16>, vector<8x128xf32> -> vector<8x128xf32>
    %c0_3 = arith.constant 0 : index
    %c0_4 = arith.constant 0 : index
    %3 = vector.load %arg3[%c0_3, %c0_4] : memref<1x128xf32, #tpu.memory_space<vmem>>, vector<1x128xf32>
    %4 = vector.broadcast %3 : vector<1x128xf32> to vector<8x128xf32>
    %5 = arith.addf %2, %4 : vector<8x128xf32>
    %6 = math.tanh %5 : vector<8x128xf32>
    %7 = arith.truncf %6 : vector<8x128xf32> to vector<8x128xbf16>
    %c0_5 = arith.constant 0 : index
    %c0_6 = arith.constant 0 : index
    %8 = vector.load %arg4[%c0_5, %c0_6] : memref<128x128xbf16, #tpu.memory_space<vmem>>, vector<128x128xbf16>
    %cst_7 = arith.constant dense<0.000000e+00> : vector<8x128xf32>
    %9 = tpu.matmul %7, %8, %cst_7 {dimension_numbers = #tpu.dot_dimension_numbers<[1], [0], [0], [1], [0, 0, 1, 1], [], []>} : vector<8x128xbf16>, vector<128x128xbf16>, vector<8x128xf32> -> vector<8x128xf32>
    %c0_8 = arith.constant 0 : index
    %c0_9 = arith.constant 0 : index
    %10 = vector.load %arg5[%c0_8, %c0_9] : memref<1x128xf32, #tpu.memory_space<vmem>>, vector<1x128xf32>
    %11 = vector.broadcast %10 : vector<1x128xf32> to vector<8x128xf32>
    %12 = arith.addf %9, %11 : vector<8x128xf32>
    %13 = tpu.iota {dimensions = array<i32: 1>} : vector<8x128xi32>
    %c16_i32 = arith.constant 16 : i32
    %14 = vector.broadcast %c16_i32 : i32 to vector<8x128xi32>
    %15 = arith.cmpi sge, %13, %14 : vector<8x128xi32>
    %16 = math.exp %12 : vector<8x128xf32>
    %17 = arith.select %15, %16, %12 : vector<8x128xi1>, vector<8x128xf32>
    %c0_10 = arith.constant 0 : index
    %c0_11 = arith.constant 0 : index
    %18 = vector.load %arg6[%c0_10, %c0_11] : memref<8x128xf32, #tpu.memory_space<vmem>>, vector<8x128xf32>
    tpu.vector_store %arg6[%c0_10, %c0_11], %17 {strides = array<i32>} : memref<8x128xf32, #tpu.memory_space<vmem>>, vector<8x128xf32>,
    return
  }
  func.func @transform_0(%arg0: i32) -> (i32, i32) {
    %c0_i32 = arith.constant 0 : i32
    %c0_i32_0 = arith.constant 0 : i32
    return %arg0, %c0_i32 : i32, i32
  }
  func.func @transform_1(%arg0: i32) -> (i32, i32) {
    %c0_i32 = arith.constant 0 : i32
    %c0_i32_0 = arith.constant 0 : i32
    %c0_i32_1 = arith.constant 0 : i32
    return %c0_i32, %c0_i32_0 : i32, i32
  }
  func.func @transform_2(%arg0: i32) -> (i32, i32) {
    %c0_i32 = arith.constant 0 : i32
    %c0_i32_0 = arith.constant 0 : i32
    %c0_i32_1 = arith.constant 0 : i32
    return %c0_i32, %c0_i32_0 : i32, i32
  }
  func.func @transform_3(%arg0: i32) -> (i32, i32) {
    %c0_i32 = arith.constant 0 : i32
    %c0_i32_0 = arith.constant 0 : i32
    %c0_i32_1 = arith.constant 0 : i32
    return %c0_i32, %c0_i32_0 : i32, i32
  }
  func.func @transform_4(%arg0: i32) -> (i32, i32) {
    %c0_i32 = arith.constant 0 : i32
    %c0_i32_0 = arith.constant 0 : i32
    %c0_i32_1 = arith.constant 0 : i32
    return %c0_i32, %c0_i32_0 : i32, i32
  }
  func.func @transform_5(%arg0: i32) -> (i32, i32) {
    %c0_i32 = arith.constant 0 : i32
    %c0_i32_0 = arith.constant 0 : i32
    return %arg0, %c0_i32 : i32, i32
  }
}

</mosaic_0001>

<llo_original>
// kernel: tpu_custom_call.1
$region0: #{tpu_custom_call.1}
  #allocation0 [shape = 'u32[]', space=smem, size = 0x4, offset = 0x4, fixed_abs, tag = 'smem constant byte address 0x4 - core index']
  #allocation1 [shape = 'u32[144,128]{1,0:T(1,128)}', space=vmem, size = 0x12000, scoped, tag = 'internal scratch']
  %s0 = inlined_call_operand.hbm [shape: bf16[8,64], index: 0, kind: input, shape index: {}]
  %s1 = inlined_call_operand.hbm [shape: bf16[64,128], index: 1, kind: input, shape index: {}]
  %s2 = inlined_call_operand.vmem [shape: f32[1,128], index: 2, kind: input, shape index: {}]
  %s3 = inlined_call_operand.hbm [shape: bf16[128,128], index: 3, kind: input, shape index: {}]
  %s4 = inlined_call_operand.vmem [shape: f32[1,128], index: 4, kind: input, shape index: {}]
  %s5 = inlined_call_operand.hbm [shape: f32[8,128], index: 5, kind: output, shape index: {}]
  %s6 = sld [smem:[#allocation0]]
  $region42: #{tpu_custom_call.1} parent=0
    _
  %s8 = ssub.s32 1, %s6
  %s9 = scalar_select 0, %s8, %s6
  $region1: #{tpu_custom_call.1} parent=0
    #allocation2 [shape = 'u8[2048]{0}', space=vmem, size = 0x800, scoped, tag = 'input window, operand 0, single buffered']
    #allocation3 [shape = 's32[1]{0}', space=sflag, size = 0x4, scoped, tag = 'scoped memory for tpu_custom_call.1']
    #allocation4 [shape = 's32[1]{0}', space=sflag, size = 0x4, scoped, tag = 'scoped memory for tpu_custom_call.1']
    #allocation5 [shape = 'u8[16384]{0}', space=vmem, size = 0x4000, scoped, tag = 'input window, operand 1, single buffered']
    #allocation6 [shape = 's32[1]{0}', space=sflag, size = 0x4, scoped, tag = 'scoped memory for tpu_custom_call.1']
    #allocation7 [shape = 'u8[32768]{0}', space=vmem, size = 0x8000, scoped, tag = 'input window, operand 3, single buffered']
    #allocation8 [shape = 'u8[4096]{0}', space=vmem, size = 0x1000, scoped, tag = 'output window, operand 0, single buffered']
    %10 = vsyncpa [#allocation3], 0
    %11 = vsyncpa [#allocation6], 0
    %12 = vsyncpa [#allocation4], 0
    // Predicated region
    $region2: #{tpu_custom_call.1} parent=1 // pred_check
      _
    $region3: #{tpu_custom_call.1} parent=1 // pred_check_branch
      %14 = sbr.rel (0) target = $region5
    $region4: #{tpu_custom_call.1} parent=1 // pred_region
      %s16 = ssub.s32 64, 64
      %17 = vsyncadd [#allocation3], %s16
      %s19 = sshll.u32 [#allocation2], 4
      %s20 = int_to_ptr.vmem [resolvable:$true] %s19
      %22 = dma.hbm_to_vmem [thread:$0]  %s0, 64, %s20, [#allocation3]
    $region5: #{tpu_custom_call.1} parent=1 // pred_fallthru
      _
    // Predicated region
    $region6: #{tpu_custom_call.1} parent=1 // pred_check
      _
    $region7: #{tpu_custom_call.1} parent=1 // pred_check_branch
      %24 = sbr.rel (0) target = $region9
    $region8: #{tpu_custom_call.1} parent=1 // pred_region
      %s26 = ssub.s32 512, 512
      %27 = vsyncadd [#allocation6], %s26
      %s28 = sshll.u32 [#allocation5], 4
      %s29 = int_to_ptr.vmem [resolvable:$true] %s28
      %34 = dma.hbm_to_vmem [thread:$0]  %s1, 512, %s29, [#allocation6], 64, 64, 4
    $region9: #{tpu_custom_call.1} parent=1 // pred_fallthru
      _
    // Predicated region
    $region10: #{tpu_custom_call.1} parent=1 // pred_check
      _
    $region11: #{tpu_custom_call.1} parent=1 // pred_check_branch
      %36 = sbr.rel (0) target = $region13
    $region12: #{tpu_custom_call.1} parent=1 // pred_region
      _
    $region13: #{tpu_custom_call.1} parent=1 // pred_fallthru
      _
    // Predicated region
    $region14: #{tpu_custom_call.1} parent=1 // pred_check
      _
    $region15: #{tpu_custom_call.1} parent=1 // pred_check_branch
      %38 = sbr.rel (0) target = $region17
    $region16: #{tpu_custom_call.1} parent=1 // pred_region
      %s40 = ssub.s32 1024, 1024
      %41 = vsyncadd [#allocation6], %s40
      %s42 = sshll.u32 [#allocation7], 4
      %s43 = int_to_ptr.vmem [resolvable:$true] %s42
      %48 = dma.hbm_to_vmem [thread:$0]  %s3, 1024, %s43, [#allocation6], 64, 64, 4
    $region17: #{tpu_custom_call.1} parent=1 // pred_fallthru
      _
    // Predicated region
    $region18: #{tpu_custom_call.1} parent=1 // pred_check
      _
    $region19: #{tpu_custom_call.1} parent=1 // pred_check_branch
      %50 = sbr.rel (0) target = $region21
    $region20: #{tpu_custom_call.1} parent=1 // pred_region
      _
    $region21: #{tpu_custom_call.1} parent=1 // pred_fallthru
      _
    // Predicated region
    $region22: #{tpu_custom_call.1} parent=1 // pred_check
      _
    $region23: #{tpu_custom_call.1} parent=1 // pred_check_branch
      %52 = sbr.rel (0) target = $region25
    $region24: #{tpu_custom_call.1} parent=1 // pred_region
      %53 = dma.done [#allocation3], 64
    $region25: #{tpu_custom_call.1} parent=1 // pred_fallthru
      _
    // Predicated region
    $region26: #{tpu_custom_call.1} parent=1 // pred_check
      _
    $region27: #{tpu_custom_call.1} parent=1 // pred_check_branch
      %55 = sbr.rel (0) target = $region29
    $region28: #{tpu_custom_call.1} parent=1 // pred_region
      %56 = dma.done [#allocation6], 512
    $region29: #{tpu_custom_call.1} parent=1 // pred_fallthru
      _
    // Predicated region
    $region30: #{tpu_custom_call.1} parent=1 // pred_check
      _
    $region31: #{tpu_custom_call.1} parent=1 // pred_check_branch
      %58 = sbr.rel (0) target = $region33
    $region32: #{tpu_custom_call.1} parent=1 // pred_region
      %59 = dma.done [#allocation6], 1024
    $region33: #{tpu_custom_call.1} parent=1 // pred_fallthru
      _
    %v61 = vld [vmem:[#allocation2] sm:$0xf]
    %v62 = vld [vmem:[#allocation5] sm:$0xf]
    %v63 = vld [vmem:[#allocation5 + $0x4] sm:$0xf]
    %v64 = vld [vmem:[#allocation5 + $0x8] sm:$0xf]
    %v65 = vld [vmem:[#allocation5 + $0xc] sm:$0xf]
    %v66 = vld [vmem:[#allocation5 + $0x10] sm:$0xf]
    %v67 = vld [vmem:[#allocation5 + $0x14] sm:$0xf]
    %v68 = vld [vmem:[#allocation5 + $0x18] sm:$0xf]
    %v69 = vld [vmem:[#allocation5 + $0x1c] sm:$0xf]
    %v70 = vld [vmem:[%s2] sm:$0x1]
    %v72 = vlaneseq
    %v73 = vshrl.u32 %v72, 7
    %v74 = vsub.s32 0, %v73
    %v75 = vrot.slane %v70, %v74
    %v85 = vunpack.c.l.b16 %v62
    %v86 = vunpack.c.l.b16 %v63
    %v87 = vunpack.c.l.b16 %v64
    %v88 = vunpack.c.l.b16 %v65
    %v89 = vunpack.c.l.b16 %v66
    %v90 = vunpack.c.l.b16 %v67
    %v91 = vunpack.c.l.b16 %v68
    %v92 = vunpack.c.l.b16 %v69
    %v93 = vpack.c.b16 %v86, %v85
    %v94 = vpack.c.b16 %v88, %v87
    %v95 = vpack.c.b16 %v90, %v89
    %v96 = vpack.c.b16 %v92, %v91
    %vm101 = vcmask 523264
    %v103 = vsel %vm101, %v61, 0
    %105 = vmatprep.subr.bf16.mxu0 0
    %106 = vmatpush1.bf16.msra.mxu0 %v93
    %107 = vmatprep.subr.bf16.mxu0 0
    %108 = vmatpush1.bf16.msra.mxu0 %v94
    %109 = vmatprep.subr.bf16.mxu0 0
    %110 = vmatpush1.bf16.msra.mxu0 %v95
    %111 = vmatprep.subr.bf16.mxu0 0
    %112 = vmatpush1.bf16.msra.mxu0 %v96
    %113 = vmatprep.subr.bf16.mxu0 0
    %114 = vmatpush1.bf16.msra.mxu0 0
    %115 = vmatprep.subr.bf16.mxu0 0
    %116 = vmatpush1.bf16.msra.mxu0 0
    %117 = vmatprep.subr.bf16.mxu0 0
    %118 = vmatpush1.bf16.msra.mxu0 0
    %119 = vmatprep.subr.bf16.mxu0 0
    %120 = vmatpush1.bf16.msra.mxu0 0
    %121 = vmatprep.subr.bf16.mxu0 0
    %122 = vmatpush1.bf16.msra.mxu0 0
    %123 = vmatprep.subr.bf16.mxu0 0
    %124 = vmatpush1.bf16.msra.mxu0 0
    %125 = vmatprep.subr.bf16.mxu0 0
    %126 = vmatpush1.bf16.msra.mxu0 0
    %127 = vmatprep.subr.bf16.mxu0 0
    %128 = vmatpush1.bf16.msra.mxu0 0
    %129 = vmatprep.subr.bf16.mxu0 0
    %130 = vmatpush1.bf16.msra.mxu0 0
    %131 = vmatprep.subr.bf16.mxu0 0
    %132 = vmatpush1.bf16.msra.mxu0 0
    %133 = vmatprep.subr.bf16.mxu0 0
    %134 = vmatpush1.bf16.msra.mxu0 0
    %135 = vmatprep.subr.bf16.mxu0 0
    %136 = vmatpush1.bf16.msra.mxu0 0
    %137 = vmatprep.mubr.bf16.mxu0 0
    %138 = vmatmul.mubr.bf16.gmra.mrb[0].mxu0 %v103
    %v139 = vpop.f32.mrb[0].mxu0
    %v140 = vadd.f32 %v75, %v139
    %v141 = vpop.f32.mrb[0].mxu0
    %v142 = vpop.f32.mrb[0].mxu0
    %v143 = vpop.f32.mrb[0].mxu0
    %144 = vdwg.mxu0
    %v145 = vtanh.pop %v140
    %v146 = vpack.c.bf16 %v145, %v145
    %v147 = vld [vmem:[#allocation7] sm:$0xf]
    %v148 = vld [vmem:[#allocation7 + $0x4] sm:$0xf]
    %v149 = vld [vmem:[#allocation7 + $0x8] sm:$0xf]
    %v150 = vld [vmem:[#allocation7 + $0xc] sm:$0xf]
    %v151 = vld [vmem:[#allocation7 + $0x10] sm:$0xf]
    %v152 = vld [vmem:[#allocation7 + $0x14] sm:$0xf]
    %v153 = vld [vmem:[#allocation7 + $0x18] sm:$0xf]
    %v154 = vld [vmem:[#allocation7 + $0x1c] sm:$0xf]
    %v155 = vld [vmem:[#allocation7 + $0x20] sm:$0xf]
    %v156 = vld [vmem:[#allocation7 + $0x24] sm:$0xf]
    %v157 = vld [vmem:[#allocation7 + $0x28] sm:$0xf]
    %v158 = vld [vmem:[#allocation7 + $0x2c] sm:$0xf]
    %v159 = vld [vmem:[#allocation7 + $0x30] sm:$0xf]
    %v160 = vld [vmem:[#allocation7 + $0x34] sm:$0xf]
    %v161 = vld [vmem:[#allocation7 + $0x38] sm:$0xf]
    %v162 = vld [vmem:[#allocation7 + $0x3c] sm:$0xf]
    %v163 = vld [vmem:[%s4] sm:$0x1]
    %v165 = vlaneseq
    %v166 = vshrl.u32 %v165, 7
    %v167 = vsub.s32 0, %v166
    %v168 = vrot.slane %v163, %v167
    %v186 = vunpack.c.l.b16 %v147
    %v187 = vunpack.c.l.b16 %v148
    %v188 = vunpack.c.l.b16 %v149
    %v189 = vunpack.c.l.b16 %v150
    %v190 = vunpack.c.l.b16 %v151
    %v191 = vunpack.c.l.b16 %v152
    %v192 = vunpack.c.l.b16 %v153
    %v193 = vunpack.c.l.b16 %v154
    %v194 = vunpack.c.l.b16 %v155
    %v195 = vunpack.c.l.b16 %v156
    %v196 = vunpack.c.l.b16 %v157
    %v197 = vunpack.c.l.b16 %v158
    %v198 = vunpack.c.l.b16 %v159
    %v199 = vunpack.c.l.b16 %v160
    %v200 = vunpack.c.l.b16 %v161
    %v201 = vunpack.c.l.b16 %v162
    %v202 = vpack.c.b16 %v187, %v186
    %v203 = vpack.c.b16 %v189, %v188
    %v204 = vpack.c.b16 %v191, %v190
    %v205 = vpack.c.b16 %v193, %v192
    %v206 = vpack.c.b16 %v195, %v194
    %v207 = vpack.c.b16 %v197, %v196
    %v208 = vpack.c.b16 %v199, %v198
    %v209 = vpack.c.b16 %v201, %v200
    %218 = vmatprep.subr.bf16.mxu0 0
    %219 = vmatpush1.bf16.msra.mxu0 %v202
    %220 = vmatprep.subr.bf16.mxu0 0
    %221 = vmatpush1.bf16.msra.mxu0 %v203
    %222 = vmatprep.subr.bf16.mxu0 0
    %223 = vmatpush1.bf16.msra.mxu0 %v204
    %224 = vmatprep.subr.bf16.mxu0 0
    %225 = vmatpush1.bf16.msra.mxu0 %v205
    %226 = vmatprep.subr.bf16.mxu0 0
    %227 = vmatpush1.bf16.msra.mxu0 %v206
    %228 = vmatprep.subr.bf16.mxu0 0
    %229 = vmatpush1.bf16.msra.mxu0 %v207
    %230 = vmatprep.subr.bf16.mxu0 0
    %231 = vmatpush1.bf16.msra.mxu0 %v208
    %232 = vmatprep.subr.bf16.mxu0 0
    %233 = vmatpush1.bf16.msra.mxu0 %v209
    %234 = vmatprep.subr.bf16.mxu0 0
    %235 = vmatpush1.bf16.msra.mxu0 0
    %236 = vmatprep.subr.bf16.mxu0 0
    %237 = vmatpush1.bf16.msra.mxu0 0
    %238 = vmatprep.subr.bf16.mxu0 0
    %239 = vmatpush1.bf16.msra.mxu0 0
    %240 = vmatprep.subr.bf16.mxu0 0
    %241 = vmatpush1.bf16.msra.mxu0 0
    %242 = vmatprep.subr.bf16.mxu0 0
    %243 = vmatpush1.bf16.msra.mxu0 0
    %244 = vmatprep.subr.bf16.mxu0 0
    %245 = vmatpush1.bf16.msra.mxu0 0
    %246 = vmatprep.subr.bf16.mxu0 0
    %247 = vmatpush1.bf16.msra.mxu0 0
    %248 = vmatprep.subr.bf16.mxu0 0
    %249 = vmatpush1.bf16.msra.mxu0 0
    %250 = vmatprep.mubr.bf16.mxu0 0
    %251 = vmatmul.mubr.bf16.gmra.mrb[0].mxu0 %v146
    %v252 = vpop.f32.mrb[0].mxu0
    %v253 = vadd.f32 %v168, %v252
    %v254 = vpop.f32.mrb[0].mxu0
    %v255 = vpop.f32.mrb[0].mxu0
    %v256 = vpop.f32.mrb[0].mxu0
    %257 = vdwg.mxu0
    %v258 = vlaneseq
    %v259 = vand.u32 %v258, 127
    %vm260 = vcmp.ge.s32.totalorder %v259, 16
    %v261 = vmul.f32 %v253, 1.442695
    %v262 = vpow.pop %v261
    %v263 = vsel %vm260, %v262, %v253
    %264 = vst [vmem:[#allocation8] sm:$0xff] %v263
    // Predicated region
    $region34: #{tpu_custom_call.1} parent=1 // pred_check
      _
    $region35: #{tpu_custom_call.1} parent=1 // pred_check_branch
      %266 = sbr.rel (0) target = $region37
    $region36: #{tpu_custom_call.1} parent=1 // pred_region
      %s268 = ssub.s32 128, 128
      %269 = vsyncadd [#allocation4], %s268
      %s271 = sshll.u32 [#allocation8], 4
      %s272 = int_to_ptr.vmem [resolvable:$true] %s271
      %274 = dma.vmem_to_hbm [thread:$0]  %s272, 128, %s5, [#allocation4]
    $region37: #{tpu_custom_call.1} parent=1 // pred_fallthru
      _
    // Predicated region
    $region38: #{tpu_custom_call.1} parent=1 // pred_check
      _
    $region39: #{tpu_custom_call.1} parent=1 // pred_check_branch
      %276 = sbr.rel (0) target = $region41
    $region40: #{tpu_custom_call.1} parent=1 // pred_region
      %277 = dma.done [#allocation4], 128
    $region41: #{tpu_custom_call.1} parent=1 // pred_fallthru
      _
    %278 = vsyncpa [#allocation3], 1
    %279 = vsyncpa [#allocation6], 1
    %280 = vsyncpa [#allocation4], 1

</llo_original>
